<compile_context>
chip_gen: v6e
topology: v6e:2x2x1
jax: 0.10.0
libtpu: 0.0.40
codegen_flags: <defaults>
</compile_context>

<pallas_src>
import functools

import numpy as np
import jax
import jax.numpy as jnp
from jax.experimental import pallas as pl
from jax.experimental.pallas import tpu as pltpu

EPS = float(np.finfo(np.float32).eps)     # == torch.finfo(torch.float32).eps
_HALO = 128                               # halo block width (chunks, lane axis)
_VMEM_BUDGET = 28 * 1024 * 1024           # target working-set bound for tile choice
_VMEM_LIMIT = 48 * 1024 * 1024            # scoped VMEM limit (< v7x's 64 MiB physical)


def _round_up(x, m):
    return ((x + m - 1) // m) * m


def _cdiv(a, b):
    return -(-a // b)


# -----------------------------------------------------------------------------
# Window generation (identical to STFT.gen_window in the PyTorch module)
# -----------------------------------------------------------------------------
def gen_window(n_frame, n_hop):
    n_overlap = n_frame - n_hop
    if n_hop * 2 > n_frame:
        n_hann = n_overlap * 2 - 1
        hann = np.sqrt(np.hanning(n_hann + 2))[1:-1]
        win = np.concatenate((
            np.zeros(1),
            hann[:n_overlap - 1],
            np.ones(n_frame - 2 * n_overlap - 1),
            hann[n_overlap - 1:],
        ))
    else:
        n_hann = 2 * n_hop - 1
        hann = np.sqrt(np.hanning(n_hann + 2))[1:-1]
        win = np.concatenate((
            np.zeros(int(n_frame / 2) - n_hop + 1),
            hann,
            np.zeros(int(n_frame / 2) - n_hop),
        ))
    return win.astype(np.float32)


# -----------------------------------------------------------------------------
# Window-folded, fused, lane-dense DFT basis:  shape (2*FPAD, n_frame)
#   rows [0, F)          : win[n] *  cos(2*pi*f*n/N)
#   rows [FPAD, FPAD+F)  : win[n] * -sin(2*pi*f*n/N)
# Column n corresponds to sample-within-frame n (== row n of the stacked
# in-kernel operand), so the whole DFT is a single K = n_frame contraction.
# -----------------------------------------------------------------------------
def _build_basis(n_frame, n_hop, F, FPAD):
    win = gen_window(n_frame, n_hop).astype(np.float64)
    n = np.arange(n_frame, dtype=np.float64)
    f = np.arange(F, dtype=np.float64)
    ang = 2.0 * np.pi * np.outer(f, n) / n_frame                   # (F, N)
    wb = np.zeros((2 * FPAD, n_frame), np.float32)
    wb[:F, :] = (np.cos(ang) * win[None, :]).astype(np.float32)
    wb[FPAD:FPAD + F, :] = (-np.sin(ang) * win[None, :]).astype(np.float32)
    return np.ascontiguousarray(wb)


# -----------------------------------------------------------------------------
# In-kernel phase (always fused in-kernel; no HBM round trip for r/i)
# -----------------------------------------------------------------------------
def _phase_native(y, x):
    return jnp.arctan2(y, x)


def _phase_poly(y, x):
    # atan2 built only from mul/add/select + an EUP reciprocal, so it lowers on
    # any Mosaic build.  Max error ~1e-5 rad (plus the approx-recip error).
    ax = jnp.abs(x)
    ay = jnp.abs(y)
    mx = jnp.maximum(ax, ay)
    mn = jnp.minimum(ax, ay)
    z = mn * pl.reciprocal(jnp.maximum(mx, jnp.float32(1e-30)), approx=True)
    z2 = z * z
    p = jnp.float32(-0.0117212)
    p = p * z2 + jnp.float32(0.05265332)
    p = p * z2 + jnp.float32(-0.11643287)
    p = p * z2 + jnp.float32(0.19354346)
    p = p * z2 + jnp.float32(-0.33262348)
    p = p * z2 + jnp.float32(0.99997726)
    a = p * z
    a = jnp.where(ay > ax, jnp.float32(np.pi / 2) - a, a)
    a = jnp.where(x < jnp.float32(0.0), jnp.float32(np.pi) - a, a)
    return jnp.where(y < jnp.float32(0.0), -a, a)


@functools.lru_cache(maxsize=1)
def _native_atan2_supported():
    """One-time, narrowly-scoped probe: does jnp.arctan2 lower inside Pallas?"""
    def _probe(y_ref, x_ref, o_ref):
        o_ref[...] = jnp.arctan2(y_ref[...], x_ref[...])
    try:
        f = pl.pallas_call(_probe, out_shape=jax.ShapeDtypeStruct((8, 128), jnp.float32))
        y = jnp.ones((8, 128), jnp.float32)
        jax.block_until_ready(f(y, y + 1.0))
        return True
    except Exception:      # probe kernel contains ONLY atan2 -> failure means atan2
        return False


# -----------------------------------------------------------------------------
# Pallas kernels
# -----------------------------------------------------------------------------
def _emit_mag_phase(acc, mag_ref, phi_ref, F, FPAD, phase_fn):
    r = acc[:F, :]                        # (F, TM)  f32
    im = acc[FPAD:FPAD + F, :]            # 8-aligned split
    mag_ref[0] = jnp.sqrt(r * r + im * im)
    phi_ref[0] = phase_fn(im + EPS, r + EPS)


def _stft_kernel_fused(sig_ref, halo_ref, wb_ref, mag_ref, phi_ref, *,
                       R, TM, F, FPAD, phase_fn):
    # sig_ref : (1, CW, TM)     chunk columns; column j feeds frames j-R+1..j
    # halo_ref: (1, CW, 128)    next 128 chunk columns (tail-frame halo)
    # wb_ref  : (2*FPAD, R*CW)  fused window-folded DFT basis
    # outputs : (1, F, TM) f32  frame index on the 128-lane axis
    c = jnp.concatenate([sig_ref[0], halo_ref[0]], axis=-1)        # (CW, TM+128)
    # Column m of `stacked` is the full length-N frame m of this tile:
    #   stacked[k*CW + t, m] = c[t, m + k] = x_pad[(tile0 + m)*hop + k*CW + t]
    stacked = jnp.concatenate([c[:, k:k + TM] for k in range(R)], axis=0)
    acc = jnp.dot(wb_ref[...], stacked, preferred_element_type=jnp.float32)
    _emit_mag_phase(acc, mag_ref, phi_ref, F, FPAD, phase_fn)


def _stft_kernel_plain(sig_ref, wb_ref, mag_ref, phi_ref, *, F, FPAD, phase_fn):
    # Fallback path (R == 1): frame columns arrive pre-materialized.
    acc = jnp.dot(wb_ref[...], sig_ref[0], preferred_element_type=jnp.float32)
    _emit_mag_phase(acc, mag_ref, phi_ref, F, FPAD, phase_fn)


# -----------------------------------------------------------------------------
# Tile choice / VMEM budgeting
# -----------------------------------------------------------------------------
def _vmem_estimate(TM, *, CW, R, F, FPAD, in_bytes):
    halo = _HALO if R > 1 else 0
    sig = 2 * CW * TM * in_bytes                               # double-buffered input
    hal = (2 * CW * _HALO * in_bytes) if R > 1 else 0
    wb = 2 * (2 * FPAD) * R * CW * in_bytes
    outs = 2 * 2 * F * TM * 4                                  # two f32 outputs, 2-deep
    tmp = (CW * (TM + halo) * in_bytes                         # in-kernel concat
           + R * CW * TM * in_bytes                            # stacked operand
           + 2 * FPAD * TM * 4                                 # f32 accumulator
           + 4 * F * TM * 4)                                   # mag/phi intermediates
    return sig + hal + wb + outs + tmp


def _choose_tile(n_frames, batch, tm_req, est_fn):
    tm = max(128, (int(tm_req) // 128) * 128)
    tm = min(tm, _round_up(n_frames, 128))
    while tm > 128 and est_fn(tm) > _VMEM_BUDGET:
        tm = max(128, _round_up(tm // 2, 128))
    # v7x has two TensorCores: ensure >=2 "parallel" grid steps, but only split
    # the frame axis when there is a single batch element, and never below 512.
    if batch == 1 and _cdiv(n_frames, tm) < 2 and tm > 512:
        tm = max(512, _round_up(_cdiv(n_frames, 2), 128))
    return tm


# -----------------------------------------------------------------------------
# Wrapper
# -----------------------------------------------------------------------------
@functools.partial(
    jax.jit,
    static_argnames=("n_frame", "n_hop", "tm", "use_bf16", "native_atan2"))
def _stft_impl(x, n_frame, n_hop, tm, use_bf16, native_atan2):
    B, T = x.shape
    N = n_frame
    F = N // 2 + 1
    # frame count exactly as torch.stft(center=True, pad_mode='constant')
    T_pad = T + 2 * (N // 2)
    n_frames = 1 + (T_pad - N) // n_hop

    # Fast path: hop-decomposed DFT (no overlapping-frame duplication in HBM).
    fast = (N % n_hop == 0) and (N // n_hop <= _HALO)
    if fast:
        R, CW = N // n_hop, n_hop
    else:
        # TODO(synk): hop does not divide n_frame -- fall back to materializing
        # the overlapping frames host-side (input duplicated R-fold in HBM); a
        # gcd-chunked fast path would avoid this.
        R, CW = 1, N

    FPAD = _round_up(F, 8)                   # frequency lives on the sublane axis
    in_dtype = jnp.bfloat16 if use_bf16 else jnp.float32
    in_bytes = 2 if use_bf16 else 4

    est = functools.partial(_vmem_estimate, CW=CW, R=R, F=F, FPAD=FPAD,
                            in_bytes=in_bytes)
    TM = _choose_tile(n_frames, B, tm, est)
    n_tiles = _cdiv(n_frames, TM)
    n_frames_pad = n_tiles * TM
    n_chunks_pad = n_frames_pad + (_HALO if R > 1 else 0)

    x_in = x.astype(in_dtype)
    if fast:
        pad_right = n_chunks_pad * CW - T_pad
        x_padded = jnp.pad(x_in, ((0, 0), (N // 2, N // 2 + pad_right)))
        # sig_t[b, t, j] = x_pad[b, j*hop + t]  (chunk index on the lane axis)
        # TODO(synk): this transpose is one extra HBM copy of the (small) input;
        # folding the chunk transpose into the kernel (XLU) would remove it.
        sig_t = x_padded.reshape(B, n_chunks_pad, CW).transpose(0, 2, 1)
    else:
        x_padded = jnp.pad(x_in, ((0, 0), (N // 2, N // 2)))
        idx = (np.arange(n_frames) * n_hop)[:, None] + np.arange(N)[None, :]
        frames = x_padded[:, idx]                                   # (B, nF, N)
        frames = jnp.pad(frames, ((0, 0), (0, n_frames_pad - n_frames), (0, 0)))
        sig_t = frames.transpose(0, 2, 1)                           # (B, N, nFp)

    wb = jnp.asarray(_build_basis(N, n_hop, F, FPAD)).astype(in_dtype)
    phase_fn = _phase_native if native_atan2 else _phase_poly

    out_spec = pl.BlockSpec((1, F, TM), lambda b, i: (b, 0, i))
    out_sds = jax.ShapeDtypeStruct((B, F, n_frames_pad), jnp.float32)
    wb_spec = pl.BlockSpec((2 * FPAD, R * CW), lambda b, i: (0, 0))

    if R > 1:
        kernel = functools.partial(_stft_kernel_fused, R=R, TM=TM, F=F,
                                   FPAD=FPAD, phase_fn=phase_fn)
        halo_ratio = TM // _HALO
        in_specs = [
            pl.BlockSpec((1, CW, TM), lambda b, i: (b, 0, i)),
            pl.BlockSpec((1, CW, _HALO), lambda b, i: (b, 0, (i + 1) * halo_ratio)),
            wb_spec,
        ]
        args = (sig_t, sig_t, wb)
    else:
        kernel = functools.partial(_stft_kernel_plain, F=F, FPAD=FPAD,
                                   phase_fn=phase_fn)
        in_specs = [pl.BlockSpec((1, CW, TM), lambda b, i: (b, 0, i)), wb_spec]
        args = (sig_t, wb)

    mag, phi = pl.pallas_call(
        kernel,
        out_shape=(out_sds, out_sds),
        grid_spec=pltpu.PrefetchScalarGridSpec(
            num_scalar_prefetch=0,
            grid=(B, n_tiles),
            in_specs=in_specs,
            out_specs=[out_spec, out_spec],
        ),
        compiler_params=pltpu.CompilerParams(
            dimension_semantics=("parallel", "parallel"),
            vmem_limit_bytes=_VMEM_LIMIT),
    )(*args)

    # Trailing padded frame columns hold dummy values (mag = 0, phi = pi/4);
    # this slice removes them -- it is mandatory, do not drop it.
    return mag[:, :, :n_frames], phi[:, :, :n_frames]


def stft_pallas(x, n_frame, n_hop, *, tm=2048, use_bf16=True):
    """Forward of the DTLN `STFT` module.

    Returns (mag, phi), each (B, n_frame//2 + 1, n_frames) float32 in the
    torch.stft convention (batch dim dropped for 1-D input).
    """
    squeeze = (x.ndim == 1)
    if squeeze:
        x = x[None, :]
    mag, phi = _stft_impl(x, n_frame=n_frame, n_hop=n_hop, tm=tm,
                          use_bf16=use_bf16,
                          native_atan2=_native_atan2_supported())
    if squeeze:
        mag, phi = mag[0], phi[0]
    return mag, phi


# -----------------------------------------------------------------------------
# Demo / smoke test
# -----------------------------------------------------------------------------
if __name__ == "__main__":
    N_FRAME, N_HOP = 64, 16     # STFT(n_frame=64, n_hop=16)
    B, T = 2, 256               # small (batch, time) input

    key = jax.random.PRNGKey(0)
    x = jax.random.normal(key, (B, T), dtype=jnp.float32)

    # Reference: rFFT of the windowed frames (same math torch.stft performs).
    win = gen_window(N_FRAME, N_HOP).astype(np.float64)
    x_np = np.asarray(x, np.float64)
    x_pad = np.pad(x_np, ((0, 0), (N_FRAME // 2, N_FRAME // 2)))
    n_frames = 1 + (x_pad.shape[1] - N_FRAME) // N_HOP
    idx = (np.arange(n_frames) * N_HOP)[:, None] + np.arange(N_FRAME)[None, :]
    frames = x_pad[:, idx] * win[None, None, :]
    y_ref = np.fft.rfft(frames, axis=-1)                            # (B, nF, F)
    mag_ref = np.abs(y_ref).transpose(0, 2, 1).astype(np.float32)
    phi_ref = np.arctan2(y_ref.imag + EPS, y_ref.real + EPS)
    phi_ref = phi_ref.transpose(0, 2, 1).astype(np.float32)

    # --- f32 path: tight accuracy check ------------------------------------
    mag32, phi32 = stft_pallas(x, N_FRAME, N_HOP, use_bf16=False)
    jax.block_until_ready((mag32, phi32))
    mag32, phi32 = np.asarray(mag32), np.asarray(phi32)
    assert mag32.shape == (B, N_FRAME // 2 + 1, n_frames)
    assert phi32.shape == mag32.shape
    assert np.allclose(mag32, mag_ref, atol=2e-3, rtol=2e-3)
    assert np.all(np.isfinite(phi32))
    good = mag_ref > 1e-2          # wrap-safe phase check on well-conditioned bins
    cos_err = np.abs(np.cos(phi32) - np.cos(phi_ref))
    sin_err = np.abs(np.sin(phi32) - np.sin(phi_ref))
    assert np.all(cos_err[good] < 5e-3) and np.all(sin_err[good] < 5e-3)

    # --- default (bf16 operand) path: loose accuracy check ------------------
    magb, phib = stft_pallas(x, N_FRAME, N_HOP)            # use_bf16=True default
    jax.block_until_ready((magb, phib))
    magb, phib = np.asarray(magb), np.asarray(phib)
    assert magb.shape == mag32.shape
    assert np.all(np.isfinite(magb)) and np.all(np.isfinite(phib))
    assert np.allclose(magb, mag_ref, atol=5e-2 * float(mag_ref.max()), rtol=5e-2)
    strong = mag_ref > 2.0
    cos_err = np.abs(np.cos(phib) - np.cos(phi_ref))
    sin_err = np.abs(np.sin(phib) - np.sin(phi_ref))
    assert np.all(cos_err[strong] < 0.15) and np.all(sin_err[strong] < 0.15)

    print("KERNEL_OK")
</pallas_src>

<mosaic_0001>
module attributes {stable_mosaic.version = 11 : i64} {
  func.func @_probe(%arg0: memref<8x128xf32, #tpu.memory_space<vmem>>, %arg1: memref<8x128xf32, #tpu.memory_space<vmem>>, %arg2: memref<8x128xf32, #tpu.memory_space<vmem>>) attributes {dimension_semantics = [], scalar_prefetch = 0 : i64, scratch_operands = 0 : i64, tpu.core_type = #tpu.core_type<tc>} {
    %c0 = arith.constant 0 : index
    %c0_0 = arith.constant 0 : index
    %0 = vector.load %arg0[%c0, %c0_0] : memref<8x128xf32, #tpu.memory_space<vmem>>, vector<8x128xf32>
    %c0_1 = arith.constant 0 : index
    %c0_2 = arith.constant 0 : index
    %1 = vector.load %arg1[%c0_1, %c0_2] : memref<8x128xf32, #tpu.memory_space<vmem>>, vector<8x128xf32>
    %2 = math.atan2 %0, %1 : vector<8x128xf32>
    %c0_3 = arith.constant 0 : index
    %c0_4 = arith.constant 0 : index
    %3 = vector.load %arg2[%c0_3, %c0_4] : memref<8x128xf32, #tpu.memory_space<vmem>>, vector<8x128xf32>
    tpu.vector_store %arg2[%c0_3, %c0_4], %2 {strides = array<i32>} : memref<8x128xf32, #tpu.memory_space<vmem>>, vector<8x128xf32>,
    return
  }
}

module attributes {stable_mosaic.version = 11 : i64} {
  func.func @_stft_kernel_fused(%arg0: i32, %arg1: i32, %arg2: memref<1x16x128xf32, #tpu.memory_space<vmem>>, %arg3: memref<1x16x128xf32, #tpu.memory_space<vmem>>, %arg4: memref<80x64xf32, #tpu.memory_space<vmem>>, %arg5: memref<1x33x128xf32, #tpu.memory_space<vmem>>, %arg6: memref<1x33x128xf32, #tpu.memory_space<vmem>>) attributes {dimension_semantics = [#tpu.dimension_semantics<parallel>, #tpu.dimension_semantics<parallel>], iteration_bounds = array<i64: 2, 1>, scalar_prefetch = 0 : i64, scratch_operands = 0 : i64, tpu.core_type = #tpu.core_type<tc>, window_params = [{transform_indices = @transform_0, window_bounds = array<i64: 1, 16, 128>}, {transform_indices = @transform_1, window_bounds = array<i64: 1, 16, 128>}, {pipeline_mode = #tpu.pipeline_mode<synchronous>, transform_indices = @transform_2, window_bounds = array<i64: 80, 64>}, {transform_indices = @transform_3, window_bounds = array<i64: 1, 33, 128>}, {transform_indices = @transform_4, window_bounds = array<i64: 1, 33, 128>}]} {
    %c0 = arith.constant 0 : index
    %c0_0 = arith.constant 0 : index
    %c0_1 = arith.constant 0 : index
    %0 = vector.load %arg2[%c0, %c0_0, %c0_1] : memref<1x16x128xf32, #tpu.memory_space<vmem>>, vector<1x16x128xf32>
    %1 = vector.shape_cast %0 : vector<1x16x128xf32> to vector<16x128xf32>
    %c0_2 = arith.constant 0 : index
    %c0_3 = arith.constant 0 : index
    %c0_4 = arith.constant 0 : index
    %2 = vector.load %arg3[%c0_2, %c0_3, %c0_4] : memref<1x16x128xf32, #tpu.memory_space<vmem>>, vector<1x16x128xf32>
    %3 = vector.shape_cast %2 : vector<1x16x128xf32> to vector<16x128xf32>
    %4 = tpu.concatenate %1, %3 in 1 : vector<16x128xf32>, vector<16x128xf32> -> vector<16x256xf32>
    %5 = vector.extract_strided_slice %4 {offsets = [0, 0], sizes = [16, 128], strides = [1, 1]} : vector<16x256xf32> to vector<16x128xf32>
    %6 = vector.extract_strided_slice %4 {offsets = [0, 1], sizes = [16, 128], strides = [1, 1]} : vector<16x256xf32> to vector<16x128xf32>
    %7 = vector.extract_strided_slice %4 {offsets = [0, 2], sizes = [16, 128], strides = [1, 1]} : vector<16x256xf32> to vector<16x128xf32>
    %8 = vector.extract_strided_slice %4 {offsets = [0, 3], sizes = [16, 128], strides = [1, 1]} : vector<16x256xf32> to vector<16x128xf32>
    %9 = tpu.concatenate %5, %6, %7, %8 in 0 : vector<16x128xf32>, vector<16x128xf32>, vector<16x128xf32>, vector<16x128xf32> -> vector<64x128xf32>
    %c0_5 = arith.constant 0 : index
    %c0_6 = arith.constant 0 : index
    %10 = vector.load %arg4[%c0_5, %c0_6] : memref<80x64xf32, #tpu.memory_space<vmem>>, vector<80x64xf32>
    %cst = arith.constant dense<0.000000e+00> : vector<80x128xf32>
    %11 = tpu.matmul %10, %9, %cst {dimension_numbers = #tpu.dot_dimension_numbers<[1], [0], [0], [1], [0, 0, 1, 1], [], []>} : vector<80x64xf32>, vector<64x128xf32>, vector<80x128xf32> -> vector<80x128xf32>
    %12 = vector.extract_strided_slice %11 {offsets = [0, 0], sizes = [33, 128], strides = [1, 1]} : vector<80x128xf32> to vector<33x128xf32>
    %13 = vector.extract_strided_slice %11 {offsets = [40, 0], sizes = [33, 128], strides = [1, 1]} : vector<80x128xf32> to vector<33x128xf32>
    %14 = arith.mulf %12, %12 : vector<33x128xf32>
    %15 = arith.mulf %13, %13 : vector<33x128xf32>
    %16 = arith.addf %14, %15 : vector<33x128xf32>
    %17 = math.sqrt %16 : vector<33x128xf32>
    %c0_7 = arith.constant 0 : index
    %c0_8 = arith.constant 0 : index
    %c0_9 = arith.constant 0 : index
    %18 = vector.load %arg5[%c0_7, %c0_8, %c0_9] : memref<1x33x128xf32, #tpu.memory_space<vmem>>, vector<1x33x128xf32>
    %19 = vector.shape_cast %18 : vector<1x33x128xf32> to vector<33x128xf32>
    %20 = vector.shape_cast %17 : vector<33x128xf32> to vector<1x33x128xf32>
    tpu.vector_store %arg5[%c0_7, %c0_8, %c0_9], %20 {strides = array<i32>} : memref<1x33x128xf32, #tpu.memory_space<vmem>>, vector<1x33x128xf32>,
    %cst_10 = arith.constant 1.1920929E-7 : f32
    %21 = vector.broadcast %cst_10 : f32 to vector<33x128xf32>
    %22 = arith.addf %13, %21 : vector<33x128xf32>
    %cst_11 = arith.constant 1.1920929E-7 : f32
    %23 = vector.broadcast %cst_11 : f32 to vector<33x128xf32>
    %24 = arith.addf %12, %23 : vector<33x128xf32>
    %25 = math.absf %24 : vector<33x128xf32>
    %26 = math.absf %22 : vector<33x128xf32>
    %27 = arith.maximumf %25, %26 : vector<33x128xf32>
    %28 = arith.minimumf %25, %26 : vector<33x128xf32>
    %cst_12 = arith.constant 1.000000e-30 : f32
    %29 = vector.broadcast %cst_12 : f32 to vector<33x128xf32>
    %30 = arith.maximumf %27, %29 : vector<33x128xf32>
    %31 = tpu.reciprocal %30 {approx = true} : vector<33x128xf32> -> vector<33x128xf32>
    %32 = arith.mulf %28, %31 : vector<33x128xf32>
    %33 = arith.mulf %32, %32 : vector<33x128xf32>
    %cst_13 = arith.constant -1.172120e-02 : f32
    %34 = vector.broadcast %cst_13 : f32 to vector<33x128xf32>
    %35 = arith.mulf %34, %33 : vector<33x128xf32>
    %cst_14 = arith.constant 0.0526533201 : f32
    %36 = vector.broadcast %cst_14 : f32 to vector<33x128xf32>
    %37 = arith.addf %35, %36 : vector<33x128xf32>
    %38 = arith.mulf %37, %33 : vector<33x128xf32>
    %cst_15 = arith.constant -0.116432868 : f32
    %39 = vector.broadcast %cst_15 : f32 to vector<33x128xf32>
    %40 = arith.addf %38, %39 : vector<33x128xf32>
    %41 = arith.mulf %40, %33 : vector<33x128xf32>
    %cst_16 = arith.constant 0.193543464 : f32
    %42 = vector.broadcast %cst_16 : f32 to vector<33x128xf32>
    %43 = arith.addf %41, %42 : vector<33x128xf32>
    %44 = arith.mulf %43, %33 : vector<33x128xf32>
    %cst_17 = arith.constant -0.332623482 : f32
    %45 = vector.broadcast %cst_17 : f32 to vector<33x128xf32>
    %46 = arith.addf %44, %45 : vector<33x128xf32>
    %47 = arith.mulf %46, %33 : vector<33x128xf32>
    %cst_18 = arith.constant 0.999977231 : f32
    %48 = vector.broadcast %cst_18 : f32 to vector<33x128xf32>
    %49 = arith.addf %47, %48 : vector<33x128xf32>
    %50 = arith.mulf %49, %32 : vector<33x128xf32>
    %51 = arith.cmpf ogt, %26, %25 : vector<33x128xf32>
    %cst_19 = arith.constant 1.57079637 : f32
    %52 = vector.broadcast %cst_19 : f32 to vector<33x128xf32>
    %53 = arith.subf %52, %50 : vector<33x128xf32>
    %54 = arith.select %51, %53, %50 : vector<33x128xi1>, vector<33x128xf32>
    %cst_20 = arith.constant 0.000000e+00 : f32
    %55 = vector.broadcast %cst_20 : f32 to vector<33x128xf32>
    %56 = arith.cmpf olt, %24, %55 : vector<33x128xf32>
    %cst_21 = arith.constant 3.14159274 : f32
    %57 = vector.broadcast %cst_21 : f32 to vector<33x128xf32>
    %58 = arith.subf %57, %54 : vector<33x128xf32>
    %59 = arith.select %56, %58, %54 : vector<33x128xi1>, vector<33x128xf32>
    %cst_22 = arith.constant 0.000000e+00 : f32
    %60 = vector.broadcast %cst_22 : f32 to vector<33x128xf32>
    %61 = arith.cmpf olt, %22, %60 : vector<33x128xf32>
    %cst_23 = arith.constant 0.000000e+00 : f32
    %62 = vector.broadcast %cst_23 : f32 to vector<33x128xf32>
    %63 = arith.subf %62, %59 : vector<33x128xf32>
    %64 = arith.select %61, %63, %59 : vector<33x128xi1>, vector<33x128xf32>
    %c0_24 = arith.constant 0 : index
    %c0_25 = arith.constant 0 : index
    %c0_26 = arith.constant 0 : index
    %65 = vector.load %arg6[%c0_24, %c0_25, %c0_26] : memref<1x33x128xf32, #tpu.memory_space<vmem>>, vector<1x33x128xf32>
    %66 = vector.shape_cast %65 : vector<1x33x128xf32> to vector<33x128xf32>
    %67 = vector.shape_cast %64 : vector<33x128xf32> to vector<1x33x128xf32>
    tpu.vector_store %arg6[%c0_24, %c0_25, %c0_26], %67 {strides = array<i32>} : memref<1x33x128xf32, #tpu.memory_space<vmem>>, vector<1x33x128xf32>,
    return
  }
  func.func @transform_0(%arg0: i32, %arg1: i32) -> (i32, i32, i32) {
    %c0_i32 = arith.constant 0 : i32
    %c0_i32_0 = arith.constant 0 : i32
    return %arg0, %c0_i32, %arg1 : i32, i32, i32
  }
  func.func @transform_1(%arg0: i32, %arg1: i32) -> (i32, i32, i32) {
    %c1_i32 = arith.constant 1 : i32
    %0 = arith.addi %arg1, %c1_i32 : i32
    %c1_i32_0 = arith.constant 1 : i32
    %1 = arith.muli %0, %c1_i32_0 : i32
    %c0_i32 = arith.constant 0 : i32
    %c0_i32_1 = arith.constant 0 : i32
    return %arg0, %c0_i32, %1 : i32, i32, i32
  }
  func.func @transform_2(%arg0: i32, %arg1: i32) -> (i32, i32) {
    %c0_i32 = arith.constant 0 : i32
    %c0_i32_0 = arith.constant 0 : i32
    %c0_i32_1 = arith.constant 0 : i32
    return %c0_i32, %c0_i32_0 : i32, i32
  }
  func.func @transform_3(%arg0: i32, %arg1: i32) -> (i32, i32, i32) {
    %c0_i32 = arith.constant 0 : i32
    %c0_i32_0 = arith.constant 0 : i32
    return %arg0, %c0_i32, %arg1 : i32, i32, i32
  }
  func.func @transform_4(%arg0: i32, %arg1: i32) -> (i32, i32, i32) {
    %c0_i32 = arith.constant 0 : i32
    %c0_i32_0 = arith.constant 0 : i32
    return %arg0, %c0_i32, %arg1 : i32, i32, i32
  }
}

</mosaic_0001>

<llo_original>
// kernel: tpu_custom_call.1
$region0: #{tpu_custom_call.1}
  #allocation0 [shape = 'u32[]', space=smem, size = 0x4, offset = 0x4, fixed_abs, tag = 'smem constant byte address 0x4 - core index']
  #allocation1 [shape = 'u32[144,128]{1,0:T(1,128)}', space=vmem, size = 0x12000, scoped, tag = 'internal scratch']
  %s0 = inlined_call_operand.hbm [shape: f32[8,128], index: 0, kind: input, shape index: {}]
  %s1 = inlined_call_operand.hbm [shape: f32[8,128], index: 1, kind: input, shape index: {}]
  %s2 = inlined_call_operand.hbm [shape: f32[8,128], index: 2, kind: output, shape index: {}]
  %s3 = sld [smem:[#allocation0]]
  $region26: #{tpu_custom_call.1} parent=0
    _
  %s5 = ssub.s32 1, %s3
  %s6 = scalar_select 0, %s5, %s3
  $region1: #{tpu_custom_call.1} parent=0
    #allocation2 [shape = 'u8[4096]{0}', space=vmem, size = 0x1000, scoped, tag = 'input window, operand 0, single buffered']
    #allocation3 [shape = 's32[1]{0}', space=sflag, size = 0x4, scoped, tag = 'scoped memory for tpu_custom_call.1']
    #allocation4 [shape = 's32[1]{0}', space=sflag, size = 0x4, scoped, tag = 'scoped memory for tpu_custom_call.1']
    #allocation5 [shape = 'u8[4096]{0}', space=vmem, size = 0x1000, scoped, tag = 'input window, operand 1, single buffered']
    #allocation6 [shape = 's32[1]{0}', space=sflag, size = 0x4, scoped, tag = 'scoped memory for tpu_custom_call.1']
    #allocation7 [shape = 'u8[4096]{0}', space=vmem, size = 0x1000, scoped, tag = 'output window, operand 0, single buffered']
    %7 = vsyncpa [#allocation3], 0
    %8 = vsyncpa [#allocation6], 0
    %9 = vsyncpa [#allocation4], 0
    // Predicated region
    $region2: #{tpu_custom_call.1} parent=1 // pred_check
      _
    $region3: #{tpu_custom_call.1} parent=1 // pred_check_branch
      %11 = sbr.rel (0) target = $region5
    $region4: #{tpu_custom_call.1} parent=1 // pred_region
      %s13 = ssub.s32 128, 128
      %14 = vsyncadd [#allocation3], %s13
      %s16 = sshll.u32 [#allocation2], 4
      %s17 = int_to_ptr.vmem [resolvable:$true] %s16
      %19 = dma.hbm_to_vmem [thread:$0]  %s0, 128, %s17, [#allocation3]
    $region5: #{tpu_custom_call.1} parent=1 // pred_fallthru
      _
    // Predicated region
    $region6: #{tpu_custom_call.1} parent=1 // pred_check
      _
    $region7: #{tpu_custom_call.1} parent=1 // pred_check_branch
      %21 = sbr.rel (0) target = $region9
    $region8: #{tpu_custom_call.1} parent=1 // pred_region
      %s23 = ssub.s32 128, 128
      %24 = vsyncadd [#allocation6], %s23
      %s26 = sshll.u32 [#allocation5], 4
      %s27 = int_to_ptr.vmem [resolvable:$true] %s26
      %29 = dma.hbm_to_vmem [thread:$0]  %s1, 128, %s27, [#allocation6]
    $region9: #{tpu_custom_call.1} parent=1 // pred_fallthru
      _
    // Predicated region
    $region10: #{tpu_custom_call.1} parent=1 // pred_check
      _
    $region11: #{tpu_custom_call.1} parent=1 // pred_check_branch
      %31 = sbr.rel (0) target = $region13
    $region12: #{tpu_custom_call.1} parent=1 // pred_region
      %32 = dma.done [#allocation3], 128
    $region13: #{tpu_custom_call.1} parent=1 // pred_fallthru
      _
    // Predicated region
    $region14: #{tpu_custom_call.1} parent=1 // pred_check
      _
    $region15: #{tpu_custom_call.1} parent=1 // pred_check_branch
      %34 = sbr.rel (0) target = $region17
    $region16: #{tpu_custom_call.1} parent=1 // pred_region
      %35 = dma.done [#allocation6], 128
    $region17: #{tpu_custom_call.1} parent=1 // pred_fallthru
      _
    %v36 = vld [vmem:[#allocation2] sm:$0xff]
    %v37 = vld [vmem:[#allocation5] sm:$0xff]
    %v38 = vand.u32 2147483647, %v37
    %v39 = vand.u32 2147483647, %v36
    %v40 = vmin.f32 %v38, %v39
    %v41 = vmax.f32 %v38, %v39
    %v42 = vrcp.pop %v41
    %v43 = vmul.f32 %v40, %v42
    %v44 = vmul.f32 %v43, %v43
    %v45 = vmul.f32 0.002785687, %v44
    %v46 = vadd.f32 %v45, -0.015866
    %v47 = vmul.f32 %v46, %v44
    %v48 = vadd.f32 %v47, 0.04247222
    %v49 = vmul.f32 %v48, %v44
    %v50 = vadd.f32 %v49, -0.074975304
    %v51 = vmul.f32 %v50, %v44
    %v52 = vadd.f32 %v51, 0.1064488
    %v53 = vmul.f32 %v52, %v44
    %v54 = vadd.f32 %v53, -0.14207031
    %v55 = vmul.f32 %v54, %v44
    %v56 = vadd.f32 %v55, 0.19993454
    %v57 = vmul.f32 %v56, %v44
    %v58 = vadd.f32 %v57, -0.33333147
    %v59 = vmul.f32 %v58, %v44
    %v60 = vmul.f32 %v59, %v43
    %v61 = vadd.f32 %v60, %v43
    %vm62 = vcmp.gt.f32.partialorder %v39, %v38
    %v63 = vsub.f32 1.5707964, %v61
    %v64 = vsel %vm62, %v63, %v61
    %vm65 = vcmp.lt.f32.partialorder %v37, 0.0
    %v66 = vsub.f32 3.1415927, %v64
    %v67 = vsel %vm65, %v66, %v64
    %vm68 = vcmp.lt.s32.totalorder %v37, 0
    %v69 = vsel %vm68, 3.1415927, 0.0
    %vm70 = vcmp.eq.f32.partialorder %v36, 0.0
    %v71 = vsel %vm70, %v69, %v67
    %vm72 = vcmp.ne.f32.partialorder %v37, %v37
    %vm73 = vcmp.ne.f32.partialorder %v36, %v36
    %vm74 = vmor %vm72, %vm73
    %v75 = vsel %vm74, nan, %v71
    %vm76 = vcmp.lt.f32.partialorder %v37, 0.0
    %v77 = vsel %vm76, 2.3561945, 0.7853982
    %vm78 = vcmp.eq.s32.totalorder %v38, inf
    %vm79 = vcmp.eq.s32.totalorder %v39, inf
    %vm80 = vmand %vm78, %vm79
    %v81 = vsel %vm80, %v77, %v75
    %v82 = vand.u32 2147483647, %v81
    %v83 = vand.u32 %v36, 2147483648
    %v84 = vor.u32 %v82, %v83
    %85 = vst [vmem:[#allocation7] sm:$0xff] %v84
    // Predicated region
    $region18: #{tpu_custom_call.1} parent=1 // pred_check
      _
    $region19: #{tpu_custom_call.1} parent=1 // pred_check_branch
      %87 = sbr.rel (0) target = $region21
    $region20: #{tpu_custom_call.1} parent=1 // pred_region
      %s89 = ssub.s32 128, 128
      %90 = vsyncadd [#allocation4], %s89
      %s92 = sshll.u32 [#allocation7], 4
      %s93 = int_to_ptr.vmem [resolvable:$true] %s92
      %95 = dma.vmem_to_hbm [thread:$0]  %s93, 128, %s2, [#allocation4]
    $region21: #{tpu_custom_call.1} parent=1 // pred_fallthru
      _
    // Predicated region
    $region22: #{tpu_custom_call.1} parent=1 // pred_check
      _
    $region23: #{tpu_custom_call.1} parent=1 // pred_check_branch
      %97 = sbr.rel (0) target = $region25
    $region24: #{tpu_custom_call.1} parent=1 // pred_region
      %98 = dma.done [#allocation4], 128
    $region25: #{tpu_custom_call.1} parent=1 // pred_fallthru
      _
    %99 = vsyncpa [#allocation3], 1
    %100 = vsyncpa [#allocation6], 1
    %101 = vsyncpa [#allocation4], 1

// kernel: _stft_impl.1
$region0: #{_stft_impl.1}
  #allocation0 [shape = 'u32[]', space=smem, size = 0x4, offset = 0x4, fixed_abs, tag = 'smem constant byte address 0x4 - core index']
  #allocation1 [shape = 'u32[144,128]{1,0:T(1,128)}', space=vmem, size = 0x12000, scoped, tag = 'internal scratch']
  %s0 = inlined_call_operand.vmem [shape: f32[2,16,256], index: 0, kind: input, shape index: {}, may-alias: {0,1}]
  %s1 = inlined_call_operand.vmem [shape: f32[2,16,256], index: 1, kind: input, shape index: {}, may-alias: {0,1}]
  %s2 = inlined_call_operand.vmem [shape: f32[80,64], index: 2, kind: input, shape index: {}]
  %s3 = inlined_call_operand.vmem [shape: f32[2,33,128], index: 3, kind: output, shape index: {0}]
  %s4 = inlined_call_operand.vmem [shape: f32[2,33,128], index: 4, kind: output, shape index: {1}]
  %5 = xla_tuple %s3, %s4
  %s6 = sld [smem:[#allocation0]]
  $region129: #{_stft_impl.1} parent=0
    _
  %s8 = ssub.s32 1, %s6
  %s9 = scalar_select 0, %s8, %s6
  $region1: #{_stft_impl.1} parent=0
    #allocation2 [shape = 'u8[16384]{0}', space=vmem, size = 0x4000, scoped, tag = 'input window, operand 0']
    #allocation3 [shape = 'u8[16384]{0}', space=vmem, size = 0x4000, scoped, tag = 'input window, operand 1']
    loop: start=0, step=1, limit=4
    $region2: #{_stft_impl.1} parent=1 // loop_pre_header
      _
    $region3: #{_stft_impl.1} parent=1 // loop_header
      %s11 = sphi 0, %s15
      %p12 = scmp.ge.s32.totalorder %s11, 4
      %s18 = sphi 0, %s30
      %s19 = sphi 0, %s26
      %s20 = sphi 0, %s18
      %s21 = sphi 0, %s19
      %s22 = sphi 0, %s20
      %s23 = sphi 0, %s21
      %s35 = sphi 0, %s37
      %s38 = sphi 0, %s35
      %s39 = sphi 0, %s38
      %s55 = sphi 0, %s39
      %s65 = sphi 0, %s67
      %s68 = sphi 0, %s65
      %s69 = sphi 0, %s68
      %s85 = sphi 0, %s69
      %s89 = sphi 0, %s89
      %s91 = sphi 0, %s89
      %s92 = sphi 0, %s91
      %s106 = sphi 0, %s92
      %s114 = sphi 0, %s116
      %s117 = sphi 0, %s114
      %s118 = sphi 0, %s117
      %s134 = sphi 0, %s118
      %s142 = sphi 0, %s144
      %s145 = sphi 0, %s142
      %s146 = sphi 0, %s145
      %s162 = sphi 0, %s146
    $region4: #{_stft_impl.1} parent=1 // loop_header_branch
      %14 = sbr.rel (%p12) target = $region8
    $region5: #{_stft_impl.1} parent=1 // loop_body
      %s16 = ssub.s32 %s11, 1
      %s17 = ssub.s32 %s11, 2
      %s24 = sadd.s32 1, %s19
      %p25 = scmp.ge.s32.totalorder %s24, 1
      %s26 = scalar_select %p25, 0, %s24
      %s27 = sadd.s32 1, %s18
      %s28 = scalar_select %p25, %s27, %s18
      %p29 = scmp.ge.s32.totalorder %s28, 2
      %s30 = scalar_select %p29, 0, %s28
      %s31 = ssub.s32 %s18, %s30
      %s32 = ssub.s32 %s19, %s26
      %s33 = sor.u32 %s31, %s32
      %p34 = scmp.eq.s32.totalorder %s33, 0
      %s36 = sadd.s32 %s35, 1
      %s37 = scalar_select %p34, %s35, %s36
      %p40 = pneg %p34
      %p41 = scmp.eq.s32.totalorder %s11, 1
      %p42 = por %p40, %p41
      %p43 = scmp.ne.s32.totalorder %s35, %s38
      %p44 = scmp.eq.s32.totalorder %s11, 0
      %p45 = por %p43, %p44
      %p46 = scmp.ne.s32.totalorder %s35, %s38
      %p47 = scmp.eq.s32.totalorder %s16, 1
      %p48 = por %p46, %p47
      %p49 = scmp.ne.s32.totalorder %s38, %s39
      %p50 = scmp.eq.s32.totalorder %s16, 0
      %p51 = por %p49, %p50
      %p52 = scmp.ne.s32.totalorder %s38, %s39
      %p53 = scmp.eq.s32.totalorder %s17, 1
      %p54 = por %p52, %p53
      %p56 = scmp.ne.s32.totalorder %s39, %s55
      %p57 = scmp.eq.s32.totalorder %s17, 0
      %p58 = por %p56, %p57
      %s59 = sadd.s32 %s19, 1
      %s60 = sadd.s32 %s26, 1
      %s61 = ssub.s32 %s18, %s30
      %s62 = ssub.s32 %s59, %s60
      %s63 = sor.u32 %s61, %s62
      %p64 = scmp.eq.s32.totalorder %s63, 0
      %s66 = sadd.s32 %s65, 1
      %s67 = scalar_select %p64, %s65, %s66
      %p70 = pneg %p64
      %p71 = scmp.eq.s32.totalorder %s11, 1
      %p72 = por %p70, %p71
      %p73 = scmp.ne.s32.totalorder %s65, %s68
      %p74 = scmp.eq.s32.totalorder %s11, 0
      %p75 = por %p73, %p74
      %p76 = scmp.ne.s32.totalorder %s65, %s68
      %p77 = scmp.eq.s32.totalorder %s16, 1
      %p78 = por %p76, %p77
      %p79 = scmp.ne.s32.totalorder %s68, %s69
      %p80 = scmp.eq.s32.totalorder %s16, 0
      %p81 = por %p79, %p80
      %p82 = scmp.ne.s32.totalorder %s68, %s69
      %p83 = scmp.eq.s32.totalorder %s17, 1
      %p84 = por %p82, %p83
      %p86 = scmp.ne.s32.totalorder %s69, %s85
      %p87 = scmp.eq.s32.totalorder %s17, 0
      %p88 = por %p86, %p87
      %s90 = sadd.s32 %s89, 1
      %p93 = scmp.eq.s32.totalorder %s11, 1
      %p94 = scmp.ne.s32.totalorder %s89, %s91
      %p95 = scmp.eq.s32.totalorder %s11, 0
      %p96 = por %p94, %p95
      %p97 = scmp.ne.s32.totalorder %s89, %s91
      %p98 = scmp.eq.s32.totalorder %s16, 1
      %p99 = por %p97, %p98
      %p100 = scmp.ne.s32.totalorder %s91, %s92
      %p101 = scmp.eq.s32.totalorder %s16, 0
      %p102 = por %p100, %p101
      %p103 = scmp.ne.s32.totalorder %s91, %s92
      %p104 = scmp.eq.s32.totalorder %s17, 1
      %p105 = por %p103, %p104
      %p107 = scmp.ne.s32.totalorder %s92, %s106
      %p108 = scmp.eq.s32.totalorder %s17, 0
      %p109 = por %p107, %p108
      %s110 = ssub.s32 %s18, %s30
      %s111 = ssub.s32 %s19, %s26
      %s112 = sor.u32 %s110, %s111
      %p113 = scmp.eq.s32.totalorder %s112, 0
      %s115 = sadd.s32 %s114, 1
      %s116 = scalar_select %p113, %s114, %s115
      %p119 = pneg %p113
      %p120 = scmp.eq.s32.totalorder %s11, 1
      %p121 = por %p119, %p120
      %p122 = scmp.ne.s32.totalorder %s114, %s117
      %p123 = scmp.eq.s32.totalorder %s11, 0
      %p124 = por %p122, %p123
      %p125 = scmp.ne.s32.totalorder %s114, %s117
      %p126 = scmp.eq.s32.totalorder %s16, 1
      %p127 = por %p125, %p126
      %p128 = scmp.ne.s32.totalorder %s117, %s118
      %p129 = scmp.eq.s32.totalorder %s16, 0
      %p130 = por %p128, %p129
      %p131 = scmp.ne.s32.totalorder %s117, %s118
      %p132 = scmp.eq.s32.totalorder %s17, 1
      %p133 = por %p131, %p132
      %p135 = scmp.ne.s32.totalorder %s118, %s134
      %p136 = scmp.eq.s32.totalorder %s17, 0
      %p137 = por %p135, %p136
      %s138 = ssub.s32 %s18, %s30
      %s139 = ssub.s32 %s19, %s26
      %s140 = sor.u32 %s138, %s139
      %p141 = scmp.eq.s32.totalorder %s140, 0
      %s143 = sadd.s32 %s142, 1
      %s144 = scalar_select %p141, %s142, %s143
      %p147 = pneg %p141
      %p148 = scmp.eq.s32.totalorder %s11, 1
      %p149 = por %p147, %p148
      %p150 = scmp.ne.s32.totalorder %s142, %s145
      %p151 = scmp.eq.s32.totalorder %s11, 0
      %p152 = por %p150, %p151
      %p153 = scmp.ne.s32.totalorder %s142, %s145
      %p154 = scmp.eq.s32.totalorder %s16, 1
      %p155 = por %p153, %p154
      %p156 = scmp.ne.s32.totalorder %s145, %s146
      %p157 = scmp.eq.s32.totalorder %s16, 0
      %p158 = por %p156, %p157
      %p159 = scmp.ne.s32.totalorder %s145, %s146
      %p160 = scmp.eq.s32.totalorder %s17, 1
      %p161 = por %p159, %p160
      %p163 = scmp.ne.s32.totalorder %s146, %s162
      %p164 = scmp.eq.s32.totalorder %s17, 0
      %p165 = por %p163, %p164
      %p166 = scmp.le.s32.totalorder 1, %s11
      %p167 = scmp.lt.s32.totalorder %s11, 3
      %p168 = pnand %p166, %p167
      %p169 = pneg %p168
      // Predicated region
      $region9: #{_stft_impl.1} parent=5 // pred_check
        _
      $region10: #{_stft_impl.1} parent=5 // pred_check_branch
        %171 = sbr.rel (%p168) target = $region12
      $region11: #{_stft_impl.1} parent=5 // pred_region
        %s172 = ssub.s32 %s11, 1
        // Predicated region
        $region13: #{_stft_impl.1} parent=11 // pred_check
          %p173 = pneg %p102
        $region14: #{_stft_impl.1} parent=11 // pred_check_branch
          %175 = sbr.rel (%p173) target = $region16
        $region15: #{_stft_impl.1} parent=11 // pred_region
          _
        $region16: #{_stft_impl.1} parent=11 // pred_fallthru
          _
      $region12: #{_stft_impl.1} parent=5 // pred_fallthru
        _
      %p176 = scmp.lt.s32.totalorder %s11, 2
      // Predicated region
      $region17: #{_stft_impl.1} parent=5 // pred_check
        %p177 = pneg %p176
      $region18: #{_stft_impl.1} parent=5 // pred_check_branch
        %179 = sbr.rel (%p177) target = $region20
      $region19: #{_stft_impl.1} parent=5 // pred_region
        // Predicated region
        $region21: #{_stft_impl.1} parent=19 // pred_check
          %p180 = pneg %p45
        $region22: #{_stft_impl.1} parent=19 // pred_check_branch
          %182 = sbr.rel (%p180) target = $region24
        $region23: #{_stft_impl.1} parent=19 // pred_region
          %s183 = sand.u32 %s35, 1
          %s184 = sand.u32 %s35, 1
          %s185 = smul.addr %s184, 16
          %s186 = scalar_lea.vmem [#allocation2], %s185
          %s187 = smul.addr %s18, 4
          %s188 = sadd.s32 %s19, %s187
          %s189 = smul.addr %s188, 8
          %s190 = scalar_lea.vmem %s0, %s189
          // Predicated region
          $region25: #{_stft_impl.1} parent=23 // pred_check
            _
          $region26: #{_stft_impl.1} parent=23 // pred_check_branch
            %192 = sbr.rel (0) target = $region28
          $region27: #{_stft_impl.1} parent=23 // pred_region
            // Predicated region
            $region29: #{_stft_impl.1} parent=27 // pred_check
              _
            $region30: #{_stft_impl.1} parent=27 // pred_check_branch
              %194 = sbr.rel (0) target = $region32
            $region31: #{_stft_impl.1} parent=27 // pred_region
              // Predicated region
              $region44: #{_stft_impl.1} parent=31 // pred_check
                _
              $region45: #{_stft_impl.1} parent=31 // pred_check_branch
                %212 = sbr.rel (0) target = $region47
              $region46: #{_stft_impl.1} parent=31 // pred_region
                loop: start=0, step=1, limit=1
                $region48: #{_stft_impl.1} parent=46 // loop_pre_header
                  _
                $region49: #{_stft_impl.1} parent=46 // loop_header
                  %s214 = sphi 0, %s218
                  %p215 = scmp.ge.s32.totalorder %s214, 1
                  %s219 = sphi %s190, %s190
                  %s220 = sphi %s186, %s186
                $region50: #{_stft_impl.1} parent=46 // loop_header_branch
                  %217 = sbr.rel (%p215) target = $region54
                $region51: #{_stft_impl.1} parent=46 // loop_body
                  %v221 = vld [vmem:[%s219] sm:$0xff]
                  %222 = vst [vmem:[%s220] sm:$0xff] %v221
                  %v223 = vld [vmem:[%s219 + $0x10] sm:$0xff]
                  %224 = vst [vmem:[%s220 + $0x8] sm:$0xff] %v223
                $region52: #{_stft_impl.1} parent=46 // loop_footer
                  %s218 = sadd.s32 1, %s214
                $region53: #{_stft_impl.1} parent=46 // loop_footer_branch
                  %213 = sbr.rel target = $region49
                $region54: #{_stft_impl.1} parent=46 // loop_exit
                  _
              $region47: #{_stft_impl.1} parent=31 // pred_fallthru
                _
              // Predicated region
              $region55: #{_stft_impl.1} parent=31 // pred_check
                _
              $region56: #{_stft_impl.1} parent=31 // pred_check_branch
                %226 = sbr.rel target = $region58
              $region57: #{_stft_impl.1} parent=31 // pred_region
                _
              $region58: #{_stft_impl.1} parent=31 // pred_fallthru
                _
            $region32: #{_stft_impl.1} parent=27 // pred_fallthru
              _
            // Predicated region
            $region33: #{_stft_impl.1} parent=27 // pred_check
              _
            $region34: #{_stft_impl.1} parent=27 // pred_check_branch
              %196 = sbr.rel target = $region36
            $region35: #{_stft_impl.1} parent=27 // pred_region
              %s198 = ssub.s32 256, 1
              loop: start=0, step=1, limit=1
              $region37: #{_stft_impl.1} parent=35 // loop_pre_header
                _
              $region38: #{_stft_impl.1} parent=35 // loop_header
                %s200 = sphi 0, %s204
                %p201 = scmp.ge.s32.totalorder %s200, 1
                %s205 = sphi %s190, %s190
                %s206 = sphi %s186, %s186
              $region39: #{_stft_impl.1} parent=35 // loop_header_branch
                %203 = sbr.rel (%p201) target = $region43
              $region40: #{_stft_impl.1} parent=35 // loop_body
                %v207 = vld [vmem:[%s205] sm:%s198]
                %208 = vst [vmem:[%s206] sm:%s198] %v207
                %v209 = vld [vmem:[%s205 + $0x10] sm:%s198]
                %210 = vst [vmem:[%s206 + $0x8] sm:%s198] %v209
              $region41: #{_stft_impl.1} parent=35 // loop_footer
                %s204 = sadd.s32 1, %s200
              $region42: #{_stft_impl.1} parent=35 // loop_footer_branch
                %199 = sbr.rel target = $region38
              $region43: #{_stft_impl.1} parent=35 // loop_exit
                _
            $region36: #{_stft_impl.1} parent=27 // pred_fallthru
              _
          $region28: #{_stft_impl.1} parent=23 // pred_fallthru
            _
          %227 = vnop
        $region24: #{_stft_impl.1} parent=19 // pred_fallthru
          _
        // Predicated region
        $region59: #{_stft_impl.1} parent=19 // pred_check
          %p228 = pneg %p75
        $region60: #{_stft_impl.1} parent=19 // pred_check_branch
          %230 = sbr.rel (%p228) target = $region62
        $region61: #{_stft_impl.1} parent=19 // pred_region
          %s231 = sand.u32 %s65, 1
          %s232 = sand.u32 %s65, 1
          %s233 = smul.addr %s232, 16
          %s234 = scalar_lea.vmem [#allocation3], %s233
          %s235 = sadd.s32 %s19, 1
          %s236 = smul.addr %s18, 4
          %s237 = sadd.s32 %s235, %s236
          %s238 = smul.addr %s237, 8
          %s239 = scalar_lea.vmem %s1, %s238
          // Predicated region
          $region63: #{_stft_impl.1} parent=61 // pred_check
            _
          $region64: #{_stft_impl.1} parent=61 // pred_check_branch
            %241 = sbr.rel (0) target = $region66
          $region65: #{_stft_impl.1} parent=61 // pred_region
            // Predicated region
            $region67: #{_stft_impl.1} parent=65 // pred_check
              _
            $region68: #{_stft_impl.1} parent=65 // pred_check_branch
              %243 = sbr.rel (0) target = $region70
            $region69: #{_stft_impl.1} parent=65 // pred_region
              // Predicated region
              $region82: #{_stft_impl.1} parent=69 // pred_check
                _
              $region83: #{_stft_impl.1} parent=69 // pred_check_branch
                %261 = sbr.rel (0) target = $region85
              $region84: #{_stft_impl.1} parent=69 // pred_region
                loop: start=0, step=1, limit=1
                $region86: #{_stft_impl.1} parent=84 // loop_pre_header
                  _
                $region87: #{_stft_impl.1} parent=84 // loop_header
                  %s263 = sphi 0, %s267
                  %p264 = scmp.ge.s32.totalorder %s263, 1
                  %s268 = sphi %s239, %s239
                  %s269 = sphi %s234, %s234
                $region88: #{_stft_impl.1} parent=84 // loop_header_branch
                  %266 = sbr.rel (%p264) target = $region92
                $region89: #{_stft_impl.1} parent=84 // loop_body
                  %v270 = vld [vmem:[%s268] sm:$0xff]
                  %271 = vst [vmem:[%s269] sm:$0xff] %v270
                  %v272 = vld [vmem:[%s268 + $0x10] sm:$0xff]
                  %273 = vst [vmem:[%s269 + $0x8] sm:$0xff] %v272
                $region90: #{_stft_impl.1} parent=84 // loop_footer
                  %s267 = sadd.s32 1, %s263
                $region91: #{_stft_impl.1} parent=84 // loop_footer_branch
                  %262 = sbr.rel target = $region87
                $region92: #{_stft_impl.1} parent=84 // loop_exit
                  _
              $region85: #{_stft_impl.1} parent=69 // pred_fallthru
                _
              // Predicated region
              $region93: #{_stft_impl.1} parent=69 // pred_check
                _
              $region94: #{_stft_impl.1} parent=69 // pred_check_branch
                %275 = sbr.rel target = $region96
              $region95: #{_stft_impl.1} parent=69 // pred_region
                _
              $region96: #{_stft_impl.1} parent=69 // pred_fallthru
                _
            $region70: #{_stft_impl.1} parent=65 // pred_fallthru
              _
            // Predicated region
            $region71: #{_stft_impl.1} parent=65 // pred_check
              _
            $region72: #{_stft_impl.1} parent=65 // pred_check_branch
              %245 = sbr.rel target = $region74
            $region73: #{_stft_impl.1} parent=65 // pred_region
              %s247 = ssub.s32 256, 1
              loop: start=0, step=1, limit=1
              $region75: #{_stft_impl.1} parent=73 // loop_pre_header
                _
              $region76: #{_stft_impl.1} parent=73 // loop_header
                %s249 = sphi 0, %s253
                %p250 = scmp.ge.s32.totalorder %s249, 1
                %s254 = sphi %s239, %s239
                %s255 = sphi %s234, %s234
              $region77: #{_stft_impl.1} parent=73 // loop_header_branch
                %252 = sbr.rel (%p250) target = $region81
              $region78: #{_stft_impl.1} parent=73 // loop_body
                %v256 = vld [vmem:[%s254] sm:%s247]
                %257 = vst [vmem:[%s255] sm:%s247] %v256
                %v258 = vld [vmem:[%s254 + $0x10] sm:%s247]
                %259 = vst [vmem:[%s255 + $0x8] sm:%s247] %v258
              $region79: #{_stft_impl.1} parent=73 // loop_footer
                %s253 = sadd.s32 1, %s249
              $region80: #{_stft_impl.1} parent=73 // loop_footer_branch
                %248 = sbr.rel target = $region76
              $region81: #{_stft_impl.1} parent=73 // loop_exit
                _
            $region74: #{_stft_impl.1} parent=65 // pred_fallthru
              _
          $region66: #{_stft_impl.1} parent=61 // pred_fallthru
            _
          %276 = vnop
        $region62: #{_stft_impl.1} parent=19 // pred_fallthru
          _
      $region20: #{_stft_impl.1} parent=5 // pred_fallthru
        _
      %p277 = scmp.le.s32.totalorder 1, %s11
      %p278 = scmp.lt.s32.totalorder %s11, 3
      %p279 = pnand %p277, %p278
      %p280 = pneg %p279
      // Predicated region
      $region97: #{_stft_impl.1} parent=5 // pred_check
        _
      $region98: #{_stft_impl.1} parent=5 // pred_check_branch
        %282 = sbr.rel (%p279) target = $region100
      $region99: #{_stft_impl.1} parent=5 // pred_region
        %s283 = ssub.s32 %s11, 1
        %s284 = sand.u32 %s38, 1
        %s285 = sand.u32 %s38, 1
        %s286 = smul.addr %s285, 16
        %s287 = scalar_lea.vmem [#allocation2], %s286
        // Predicated region
        $region101: #{_stft_impl.1} parent=99 // pred_check
          %p288 = pneg %p51
        $region102: #{_stft_impl.1} parent=99 // pred_check_branch
          %290 = sbr.rel (%p288) target = $region104
        $region103: #{_stft_impl.1} parent=99 // pred_region
          _
        $region104: #{_stft_impl.1} parent=99 // pred_fallthru
          _
        %s291 = sand.u32 %s68, 1
        %s292 = sand.u32 %s68, 1
        %s293 = smul.addr %s292, 16
        %s294 = scalar_lea.vmem [#allocation3], %s293
        // Predicated region
        $region105: #{_stft_impl.1} parent=99 // pred_check
          %p295 = pneg %p81
        $region106: #{_stft_impl.1} parent=99 // pred_check_branch
          %297 = sbr.rel (%p295) target = $region108
        $region107: #{_stft_impl.1} parent=99 // pred_region
          _
        $region108: #{_stft_impl.1} parent=99 // pred_fallthru
          _
        %s298 = sand.u32 %s38, 1
        %s299 = sand.u32 %s38, 1
        %s300 = smul.addr %s299, 16
        %s301 = scalar_lea.vmem [#allocation2], %s300
        %p302 = pneg %p51
        %p303 = pneg %p48
        %s304 = sand.u32 %s68, 1
        %s305 = sand.u32 %s68, 1
        %s306 = smul.addr %s305, 16
        %s307 = scalar_lea.vmem [#allocation3], %s306
        %p308 = pneg %p81
        %p309 = pneg %p78
        %p310 = pneg %p102
        %p311 = pneg %p99
        %p312 = pneg %p130
        %p313 = pneg %p127
        %p314 = scmp.lt.s32.totalorder %s20, 1
        %s315 = scalar_select %p314, %s20, 1
        %p316 = scmp.lt.s32.totalorder %s21, 0
        %s317 = scalar_select %p316, %s21, 0
        %s318 = smul.addr %s315, 5
        %s319 = sadd.s32 %s317, %s318
        %s320 = smul.addr %s319, 8
        %s321 = scalar_lea.vmem %s3, %s320
        %p322 = pneg %p158
        %p323 = pneg %p155
        %p324 = scmp.lt.s32.totalorder %s20, 1
        %s325 = scalar_select %p324, %s20, 1
        %p326 = scmp.lt.s32.totalorder %s21, 0
        %s327 = scalar_select %p326, %s21, 0
        %s328 = smul.addr %s325, 5
        %s329 = sadd.s32 %s327, %s328
        %s330 = smul.addr %s329, 8
        %s331 = scalar_lea.vmem %s4, %s330
        %s332 = sadd.s32 %s21, 1
        %p333 = scmp.lt.s32.totalorder %s20, 1
        %s334 = scalar_select %p333, %s20, 1
        %p335 = scmp.lt.s32.totalorder %s21, 0
        %s336 = scalar_select %p335, %s21, 0
        %s337 = smul.addr %s334, 5
        %s338 = sadd.s32 %s336, %s337
        %s339 = smul.addr %s338, 8
        %s340 = scalar_lea.vmem %s3, %s339
        %p341 = scmp.lt.s32.totalorder %s20, 1
        %s342 = scalar_select %p341, %s20, 1
        %p343 = scmp.lt.s32.totalorder %s21, 0
        %s344 = scalar_select %p343, %s21, 0
        %s345 = smul.addr %s342, 5
        %s346 = sadd.s32 %s344, %s345
        %s347 = smul.addr %s346, 8
        %s348 = scalar_lea.vmem %s4, %s347
        %v349 = vld [vmem:[%s287] sm:$0xff]
        %v350 = vld [vmem:[%s287 + $0x8] sm:$0xff]
        %v351 = vld [vmem:[%s294] sm:$0xff]
        %v352 = vld [vmem:[%s294 + $0x8] sm:$0xff]
        %357 = vrot.lane.b32.xlu0 %v349, 127
        %v358 = vpop.permute.xlu0 %357
        %359 = vrot.lane.b32.xlu0 %v351, 127
        %v360 = vpop.permute.xlu0 %359
        %361 = vrot.lane.b32.xlu0 %v350, 127
        %v362 = vpop.permute.xlu0 %361
        %363 = vrot.lane.b32.xlu0 %v352, 127
        %v364 = vpop.permute.xlu0 %363
        %vm365 = vcmask 1039360
        %v366 = vsel %vm365, %v358, %v360
        %v367 = vsel %vm365, %v362, %v364
        %370 = vrot.lane.b32.xlu0 %v349, 126
        %v371 = vpop.permute.xlu0 %370
        %372 = vrot.lane.b32.xlu0 %v351, 126
        %v373 = vpop.permute.xlu0 %372
        %374 = vrot.lane.b32.xlu0 %v350, 126
        %v375 = vpop.permute.xlu0 %374
        %376 = vrot.lane.b32.xlu0 %v352, 126
        %v377 = vpop.permute.xlu0 %376
        %vm378 = vcmask 1031168
        %v379 = vsel %vm378, %v371, %v373
        %v380 = vsel %vm378, %v375, %v377
        %383 = vrot.lane.b32.xlu0 %v349, 125
        %v384 = vpop.permute.xlu0 %383
        %385 = vrot.lane.b32.xlu0 %v351, 125
        %v386 = vpop.permute.xlu0 %385
        %387 = vrot.lane.b32.xlu0 %v350, 125
        %v388 = vpop.permute.xlu0 %387
        %389 = vrot.lane.b32.xlu0 %v352, 125
        %v390 = vpop.permute.xlu0 %389
        %vm391 = vcmask 1022976
        %v392 = vsel %vm391, %v384, %v386
        %v393 = vsel %vm391, %v388, %v390
        %v396 = vld [vmem:[%s2] sm:$0xff]
        %v397 = vld [vmem:[%s2 + $0x8] sm:$0xff]
        %v398 = vld [vmem:[%s2 + $0x10] sm:$0xff]
        %v399 = vld [vmem:[%s2 + $0x18] sm:$0xff]
        %v400 = vld [vmem:[%s2 + $0x20] sm:$0xff]
        %v401 = vld [vmem:[%s2 + $0x28] sm:$0xff]
        %v402 = vld [vmem:[%s2 + $0x30] sm:$0xff]
        %v403 = vld [vmem:[%s2 + $0x38] sm:$0xff]
        %v404 = vld [vmem:[%s2 + $0x40] sm:$0xff]
        %v405 = vld [vmem:[%s2 + $0x48] sm:$0xff]
        %vm406 = vcmask 523264
        %v408 = vsel %vm406, %v396, 0
        %v411 = vsel %vm406, %v397, 0
        %v414 = vsel %vm406, %v398, 0
        %v417 = vsel %vm406, %v399, 0
        %v420 = vsel %vm406, %v400, 0
        %v423 = vsel %vm406, %v401, 0
        %v426 = vsel %vm406, %v402, 0
        %v429 = vsel %vm406, %v403, 0
        %v432 = vsel %vm406, %v404, 0
        %v435 = vsel %vm406, %v405, 0
        %437 = vmatprep.subr.mxu0 0.0
        %438 = vmatpush1.msra.mxu0 0.0
        %439 = vmatprep.subr.mxu0 0.0
        %440 = vmatpush1.msra.mxu0 0.0
        %441 = vmatprep.subr.mxu0 0.0
        %442 = vmatpush1.msra.mxu0 0.0
        %443 = vmatprep.subr.mxu0 0.0
        %444 = vmatpush1.msra.mxu0 0.0
        %445 = vmatprep.subr.mxu0 0.0
        %446 = vmatpush1.msra.mxu0 0.0
        %447 = vmatprep.subr.mxu0 0.0
        %448 = vmatpush1.msra.mxu0 0.0
        %449 = vmatprep.subr.mxu0 0.0
        %450 = vmatpush1.msra.mxu0 0.0
        %451 = vmatprep.subr.mxu0 0.0
        %452 = vmatpush1.msra.mxu0 0.0
        %453 = vmatprep.subr.mxu0 0.0
        %454 = vmatpush1.msra.mxu0 %v393
        %455 = vmatprep.subr.mxu0 0.0
        %456 = vmatpush1.msra.mxu0 %v392
        %457 = vmatprep.subr.mxu0 0.0
        %458 = vmatpush1.msra.mxu0 %v380
        %459 = vmatprep.subr.mxu0 0.0
        %460 = vmatpush1.msra.mxu0 %v379
        %461 = vmatprep.subr.mxu0 0.0
        %462 = vmatpush1.msra.mxu0 %v367
        %463 = vmatprep.subr.mxu0 0.0
        %464 = vmatpush1.msra.mxu0 %v366
        %465 = vmatprep.subr.mxu0 0.0
        %466 = vmatpush1.msra.mxu0 %v350
        %467 = vmatprep.subr.mxu0 0.0
        %468 = vmatpush1.msra.mxu0 %v349
        %469 = vmatprep.subr.mxu0 0.0
        %470 = vmatpush2.msra.mxu0 0.0
        %471 = vmatprep.subr.mxu0 0.0
        %472 = vmatpush2.msra.mxu0 0.0
        %473 = vmatprep.subr.mxu0 0.0
        %474 = vmatpush2.msra.mxu0 0.0
        %475 = vmatprep.subr.mxu0 0.0
        %476 = vmatpush2.msra.mxu0 0.0
        %477 = vmatprep.subr.mxu0 0.0
        %478 = vmatpush2.msra.mxu0 0.0
        %479 = vmatprep.subr.mxu0 0.0
        %480 = vmatpush2.msra.mxu0 0.0
        %481 = vmatprep.subr.mxu0 0.0
        %482 = vmatpush2.msra.mxu0 0.0
        %483 = vmatprep.subr.mxu0 0.0
        %484 = vmatpush2.msra.mxu0 0.0
        %485 = vmatprep.subr.mxu0 0.0
        %486 = vmatpush2.msra.mxu0 0.0
        %487 = vmatprep.subr.mxu0 0.0
        %488 = vmatpush2.msra.mxu0 0.0
        %489 = vmatprep.subr.mxu0 0.0
        %490 = vmatpush2.msra.mxu0 0.0
        %491 = vmatprep.subr.mxu0 0.0
        %492 = vmatpush2.msra.mxu0 0.0
        %493 = vmatprep.subr.mxu0 0.0
        %494 = vmatpush2.msra.mxu0 0.0
        %495 = vmatprep.subr.mxu0 0.0
        %496 = vmatpush2.msra.mxu0 0.0
        %497 = vmatprep.subr.mxu0 0.0
        %498 = vmatpush2.msra.mxu0 0.0
        %499 = vmatprep.subr.mxu0 0.0
        %500 = vmatpush2.msra.mxu0 0.0
        %501 = vmatprep.mubr.f32.mxu0 0.0
        %502 = vmatmul.mubr.f32.gmra.mxu0 %v408
        %v503 = vpop.f32.mrf.mxu0
        %v504 = vadd.f32 0.0, %v503
        %v505 = vpop.f32.mrf.mxu0
        %506 = vmatprep.mubr.f32.mxu0 0.0
        %507 = vmatmul.mubr.f32.gmra.mxu0 %v411
        %v508 = vpop.f32.mrf.mxu0
        %v509 = vadd.f32 0.0, %v508
        %v510 = vpop.f32.mrf.mxu0
        %511 = vmatprep.mubr.f32.mxu0 0.0
        %512 = vmatmul.mubr.f32.gmra.mxu0 %v414
        %v513 = vpop.f32.mrf.mxu0
        %v514 = vadd.f32 0.0, %v513
        %v515 = vpop.f32.mrf.mxu0
        %516 = vmatprep.mubr.f32.mxu0 0.0
        %517 = vmatmul.mubr.f32.gmra.mxu0 %v417
        %v518 = vpop.f32.mrf.mxu0
        %v519 = vadd.f32 0.0, %v518
        %v520 = vpop.f32.mrf.mxu0
        %521 = vmatprep.mubr.f32.mxu0 0.0
        %522 = vmatmul.mubr.f32.gmra.mxu0 %v420
        %v523 = vpop.f32.mrf.mxu0
        %v524 = vadd.f32 0.0, %v523
        %v525 = vpop.f32.mrf.mxu0
        %526 = vmatprep.mubr.f32.mxu0 0.0
        %527 = vmatmul.mubr.f32.gmra.mxu0 %v423
        %v528 = vpop.f32.mrf.mxu0
        %v529 = vadd.f32 0.0, %v528
        %v530 = vpop.f32.mrf.mxu0
        %531 = vmatprep.mubr.f32.mxu0 0.0
        %532 = vmatmul.mubr.f32.gmra.mxu0 %v426
        %v533 = vpop.f32.mrf.mxu0
        %v534 = vadd.f32 0.0, %v533
        %v535 = vpop.f32.mrf.mxu0
        %536 = vmatprep.mubr.f32.mxu0 0.0
        %537 = vmatmul.mubr.f32.gmra.mxu0 %v429
        %v538 = vpop.f32.mrf.mxu0
        %v539 = vadd.f32 0.0, %v538
        %v540 = vpop.f32.mrf.mxu0
        %541 = vmatprep.mubr.f32.mxu0 0.0
        %542 = vmatmul.mubr.f32.gmra.mxu0 %v432
        %v543 = vpop.f32.mrf.mxu0
        %v544 = vadd.f32 0.0, %v543
        %v545 = vpop.f32.mrf.mxu0
        %546 = vmatprep.mubr.f32.mxu0 0.0
        %547 = vmatmul.mubr.f32.gmra.mxu0 %v435
        %v548 = vpop.f32.mrf.mxu0
        %v549 = vadd.f32 0.0, %v548
        %v550 = vpop.f32.mrf.mxu0
        %551 = vdwg.mxu0
        %v552 = vmul.f32 %v504, %v504
        %v553 = vmul.f32 %v509, %v509
        %v554 = vmul.f32 %v514, %v514
        %v555 = vmul.f32 %v519, %v519
        %v556 = vmul.f32 %v524, %v524
        %v557 = vmul.f32 %v529, %v529
        %v558 = vmul.f32 %v534, %v534
        %v559 = vmul.f32 %v539, %v539
        %v560 = vmul.f32 %v544, %v544
        %v561 = vmul.f32 %v549, %v549
        %v562 = vadd.f32 %v552, %v557
        %v563 = vadd.f32 %v553, %v558
        %v564 = vadd.f32 %v554, %v559
        %v565 = vadd.f32 %v555, %v560
        %v566 = vadd.f32 %v556, %v561
        %v567 = vrsqrt.pop %v562
        %v568 = vmul.f32 %v562, %v567
        %vm569 = vcmp.eq.f32.partialorder %v562, inf
        %v570 = vsel %vm569, %v562, %v568
        %vm571 = vcmp.eq.f32.partialorder %v562, 0.0
        %v572 = vand.u32 %v562, 2147483648
        %v573 = vsel %vm571, %v572, %v570
        %v574 = vrsqrt.pop %v563
        %v575 = vmul.f32 %v563, %v574
        %vm576 = vcmp.eq.f32.partialorder %v563, inf
        %v577 = vsel %vm576, %v563, %v575
        %vm578 = vcmp.eq.f32.partialorder %v563, 0.0
        %v579 = vand.u32 %v563, 2147483648
        %v580 = vsel %vm578, %v579, %v577
        %v581 = vrsqrt.pop %v564
        %v582 = vmul.f32 %v564, %v581
        %vm583 = vcmp.eq.f32.partialorder %v564, inf
        %v584 = vsel %vm583, %v564, %v582
        %vm585 = vcmp.eq.f32.partialorder %v564, 0.0
        %v586 = vand.u32 %v564, 2147483648
        %v587 = vsel %vm585, %v586, %v584
        %v588 = vrsqrt.pop %v565
        %v589 = vmul.f32 %v565, %v588
        %vm590 = vcmp.eq.f32.partialorder %v565, inf
        %v591 = vsel %vm590, %v565, %v589
        %vm592 = vcmp.eq.f32.partialorder %v565, 0.0
        %v593 = vand.u32 %v565, 2147483648
        %v594 = vsel %vm592, %v593, %v591
        %v595 = vrsqrt.pop %v566
        %v596 = vmul.f32 %v566, %v595
        %vm597 = vcmp.eq.f32.partialorder %v566, inf
        %v598 = vsel %vm597, %v566, %v596
        %vm599 = vcmp.eq.f32.partialorder %v566, 0.0
        %v600 = vand.u32 %v566, 2147483648
        %v601 = vsel %vm599, %v600, %v598
        %602 = vst [vmem:[%s340] sm:$0xff] %v573
        %603 = vst [vmem:[%s340 + $0x8] sm:$0xff] %v580
        %604 = vst [vmem:[%s340 + $0x10] sm:$0xff] %v587
        %605 = vst [vmem:[%s340 + $0x18] sm:$0xff] %v594
        %606 = vst [vmem:[%s340 + $0x20] sm:$0x1] %v601
        %v607 = vadd.f32 %v529, 1.1920929e-07
        %v608 = vadd.f32 %v534, 1.1920929e-07
        %v609 = vadd.f32 %v539, 1.1920929e-07
        %v610 = vadd.f32 %v544, 1.1920929e-07
        %v611 = vadd.f32 %v549, 1.1920929e-07
        %v612 = vadd.f32 %v504, 1.1920929e-07
        %v613 = vadd.f32 %v509, 1.1920929e-07
        %v614 = vadd.f32 %v514, 1.1920929e-07
        %v615 = vadd.f32 %v519, 1.1920929e-07
        %v616 = vadd.f32 %v524, 1.1920929e-07
        %v617 = vand.u32 2147483647, %v612
        %v618 = vand.u32 2147483647, %v613
        %v619 = vand.u32 2147483647, %v614
        %v620 = vand.u32 2147483647, %v615
        %v621 = vand.u32 2147483647, %v616
        %v622 = vand.u32 2147483647, %v607
        %v623 = vand.u32 2147483647, %v608
        %v624 = vand.u32 2147483647, %v609
        %v625 = vand.u32 2147483647, %v610
        %v626 = vand.u32 2147483647, %v611
        %v627 = vmax.f32 %v617, %v622
        %v628 = vmax.f32 %v618, %v623
        %v629 = vmax.f32 %v619, %v624
        %v630 = vmax.f32 %v620, %v625
        %v631 = vmax.f32 %v621, %v626
        %v632 = vmin.f32 %v617, %v622
        %v633 = vmin.f32 %v618, %v623
        %v634 = vmin.f32 %v619, %v624
        %v635 = vmin.f32 %v620, %v625
        %v636 = vmin.f32 %v621, %v626
        %v637 = vmax.f32 %v627, 1e-30
        %v638 = vmax.f32 %v628, 1e-30
        %v639 = vmax.f32 %v629, 1e-30
        %v640 = vmax.f32 %v630, 1e-30
        %v641 = vmax.f32 %v631, 1e-30
        %v642 = vrcp.pop %v637
        %v643 = vrcp.pop %v638
        %v644 = vrcp.pop %v639
        %v645 = vrcp.pop %v640
        %v646 = vrcp.pop %v641
        %v647 = vmul.f32 %v632, %v642
        %v648 = vmul.f32 %v633, %v643
        %v649 = vmul.f32 %v634, %v644
        %v650 = vmul.f32 %v635, %v645
        %v651 = vmul.f32 %v636, %v646
        %v652 = vmul.f32 %v647, %v647
        %v653 = vmul.f32 %v648, %v648
        %v654 = vmul.f32 %v649, %v649
        %v655 = vmul.f32 %v650, %v650
        %v656 = vmul.f32 %v651, %v651
        %v657 = vmul.f32 %v652, -0.0117212
        %v658 = vmul.f32 %v653, -0.0117212
        %v659 = vmul.f32 %v654, -0.0117212
        %v660 = vmul.f32 %v655, -0.0117212
        %v661 = vmul.f32 %v656, -0.0117212
        %v662 = vadd.f32 %v657, 0.05265332
        %v663 = vadd.f32 %v658, 0.05265332
        %v664 = vadd.f32 %v659, 0.05265332
        %v665 = vadd.f32 %v660, 0.05265332
        %v666 = vadd.f32 %v661, 0.05265332
        %v667 = vmul.f32 %v662, %v652
        %v668 = vmul.f32 %v663, %v653
        %v669 = vmul.f32 %v664, %v654
        %v670 = vmul.f32 %v665, %v655
        %v671 = vmul.f32 %v666, %v656
        %v672 = vadd.f32 %v667, -0.11643287
        %v673 = vadd.f32 %v668, -0.11643287
        %v674 = vadd.f32 %v669, -0.11643287
        %v675 = vadd.f32 %v670, -0.11643287
        %v676 = vadd.f32 %v671, -0.11643287
        %v677 = vmul.f32 %v672, %v652
        %v678 = vmul.f32 %v673, %v653
        %v679 = vmul.f32 %v674, %v654
        %v680 = vmul.f32 %v675, %v655
        %v681 = vmul.f32 %v676, %v656
        %v682 = vadd.f32 %v677, 0.19354346
        %v683 = vadd.f32 %v678, 0.19354346
        %v684 = vadd.f32 %v679, 0.19354346
        %v685 = vadd.f32 %v680, 0.19354346
        %v686 = vadd.f32 %v681, 0.19354346
        %v687 = vmul.f32 %v682, %v652
        %v688 = vmul.f32 %v683, %v653
        %v689 = vmul.f32 %v684, %v654
        %v690 = vmul.f32 %v685, %v655
        %v691 = vmul.f32 %v686, %v656
        %v692 = vadd.f32 %v687, -0.33262348
        %v693 = vadd.f32 %v688, -0.33262348
        %v694 = vadd.f32 %v689, -0.33262348
        %v695 = vadd.f32 %v690, -0.33262348
        %v696 = vadd.f32 %v691, -0.33262348
        %v697 = vmul.f32 %v692, %v652
        %v698 = vmul.f32 %v693, %v653
        %v699 = vmul.f32 %v694, %v654
        %v700 = vmul.f32 %v695, %v655
        %v701 = vmul.f32 %v696, %v656
        %v702 = vadd.f32 %v697, 0.99997723
        %v703 = vadd.f32 %v698, 0.99997723
        %v704 = vadd.f32 %v699, 0.99997723
        %v705 = vadd.f32 %v700, 0.99997723
        %v706 = vadd.f32 %v701, 0.99997723
        %v707 = vmul.f32 %v702, %v647
        %v708 = vmul.f32 %v703, %v648
        %v709 = vmul.f32 %v704, %v649
        %v710 = vmul.f32 %v705, %v650
        %v711 = vmul.f32 %v706, %v651
        %vm712 = vcmp.gt.f32.partialorder %v622, %v617
        %vm713 = vcmp.gt.f32.partialorder %v623, %v618
        %vm714 = vcmp.gt.f32.partialorder %v624, %v619
        %vm715 = vcmp.gt.f32.partialorder %v625, %v620
        %vm716 = vcmp.gt.f32.partialorder %v626, %v621
        %v717 = vsub.f32 1.5707964, %v707
        %v718 = vsub.f32 1.5707964, %v708
        %v719 = vsub.f32 1.5707964, %v709
        %v720 = vsub.f32 1.5707964, %v710
        %v721 = vsub.f32 1.5707964, %v711
        %v722 = vsel %vm712, %v717, %v707
        %v723 = vsel %vm713, %v718, %v708
        %v724 = vsel %vm714, %v719, %v709
        %v725 = vsel %vm715, %v720, %v710
        %v726 = vsel %vm716, %v721, %v711
        %vm727 = vcmp.lt.f32.partialorder %v612, 0.0
        %vm728 = vcmp.lt.f32.partialorder %v613, 0.0
        %vm729 = vcmp.lt.f32.partialorder %v614, 0.0
        %vm730 = vcmp.lt.f32.partialorder %v615, 0.0
        %vm731 = vcmp.lt.f32.partialorder %v616, 0.0
        %v732 = vsub.f32 3.1415927, %v722
        %v733 = vsub.f32 3.1415927, %v723
        %v734 = vsub.f32 3.1415927, %v724
        %v735 = vsub.f32 3.1415927, %v725
        %v736 = vsub.f32 3.1415927, %v726
        %v737 = vsel %vm727, %v732, %v722
        %v738 = vsel %vm728, %v733, %v723
        %v739 = vsel %vm729, %v734, %v724
        %v740 = vsel %vm730, %v735, %v725
        %v741 = vsel %vm731, %v736, %v726
        %vm742 = vcmp.lt.f32.partialorder %v607, 0.0
        %vm743 = vcmp.lt.f32.partialorder %v608, 0.0
        %vm744 = vcmp.lt.f32.partialorder %v609, 0.0
        %vm745 = vcmp.lt.f32.partialorder %v610, 0.0
        %vm746 = vcmp.lt.f32.partialorder %v611, 0.0
        %v747 = vsub.f32 0.0, %v737
        %v748 = vsub.f32 0.0, %v738
        %v749 = vsub.f32 0.0, %v739
        %v750 = vsub.f32 0.0, %v740
        %v751 = vsub.f32 0.0, %v741
        %v752 = vsel %vm742, %v747, %v737
        %v753 = vsel %vm743, %v748, %v738
        %v754 = vsel %vm744, %v749, %v739
        %v755 = vsel %vm745, %v750, %v740
        %v756 = vsel %vm746, %v751, %v741
        %757 = vst [vmem:[%s348] sm:$0xff] %v752
        %758 = vst [vmem:[%s348 + $0x8] sm:$0xff] %v753
        %759 = vst [vmem:[%s348 + $0x10] sm:$0xff] %v754
        %760 = vst [vmem:[%s348 + $0x18] sm:$0xff] %v755
        %761 = vst [vmem:[%s348 + $0x20] sm:$0x1] %v756
        %p762 = scmp.lt.s32.totalorder %s20, 1
        %s763 = scalar_select %p762, %s20, 1
        %p764 = scmp.lt.s32.totalorder %s21, 0
        %s765 = scalar_select %p764, %s21, 0
        %s766 = smul.addr %s763, 5
        %s767 = sadd.s32 %s765, %s766
        %s768 = smul.addr %s767, 8
        %s769 = scalar_lea.vmem %s3, %s768
        %p770 = scmp.lt.s32.totalorder %s20, 1
        %s771 = scalar_select %p770, %s20, 1
        %p772 = scmp.lt.s32.totalorder %s21, 0
        %s773 = scalar_select %p772, %s21, 0
        %s774 = smul.addr %s771, 5
        %s775 = sadd.s32 %s773, %s774
        %s776 = smul.addr %s775, 8
        %s777 = scalar_lea.vmem %s4, %s776
        // Predicated region
        $region109: #{_stft_impl.1} parent=99 // pred_check
          %p778 = pneg %p127
        $region110: #{_stft_impl.1} parent=99 // pred_check_branch
          %780 = sbr.rel (%p778) target = $region112
        $region111: #{_stft_impl.1} parent=99 // pred_region
          _
        $region112: #{_stft_impl.1} parent=99 // pred_fallthru
          _
        // Predicated region
        $region113: #{_stft_impl.1} parent=99 // pred_check
          %p781 = pneg %p155
        $region114: #{_stft_impl.1} parent=99 // pred_check_branch
          %783 = sbr.rel (%p781) target = $region116
        $region115: #{_stft_impl.1} parent=99 // pred_region
          _
        $region116: #{_stft_impl.1} parent=99 // pred_fallthru
          _
      $region100: #{_stft_impl.1} parent=5 // pred_fallthru
        _
      %p784 = scmp.le.s32.totalorder 2, %s11
      // Predicated region
      $region117: #{_stft_impl.1} parent=5 // pred_check
        %p785 = pneg %p784
      $region118: #{_stft_impl.1} parent=5 // pred_check_branch
        %787 = sbr.rel (%p785) target = $region120
      $region119: #{_stft_impl.1} parent=5 // pred_region
        %s788 = ssub.s32 %s11, 2
        // Predicated region
        $region121: #{_stft_impl.1} parent=119 // pred_check
          %p789 = pneg %p133
        $region122: #{_stft_impl.1} parent=119 // pred_check_branch
          %791 = sbr.rel (%p789) target = $region124
        $region123: #{_stft_impl.1} parent=119 // pred_region
          %p792 = scmp.lt.s32.totalorder %s22, 1
          %s793 = scalar_select %p792, %s22, 1
          %p794 = scmp.lt.s32.totalorder %s23, 0
          %s795 = scalar_select %p794, %s23, 0
          %s796 = smul.addr %s793, 5
          %s797 = sadd.s32 %s795, %s796
          %s798 = smul.addr %s797, 8
          %s799 = scalar_lea.vmem %s3, %s798
        $region124: #{_stft_impl.1} parent=119 // pred_fallthru
          _
        // Predicated region
        $region125: #{_stft_impl.1} parent=119 // pred_check
          %p800 = pneg %p161
        $region126: #{_stft_impl.1} parent=119 // pred_check_branch
          %802 = sbr.rel (%p800) target = $region128
        $region127: #{_stft_impl.1} parent=119 // pred_region
          %p803 = scmp.lt.s32.totalorder %s22, 1
          %s804 = scalar_select %p803, %s22, 1
          %p805 = scmp.lt.s32.totalorder %s23, 0
          %s806 = scalar_select %p805, %s23, 0
          %s807 = smul.addr %s804, 5
          %s808 = sadd.s32 %s806, %s807
          %s809 = smul.addr %s808, 8
          %s810 = scalar_lea.vmem %s4, %s809
        $region128: #{_stft_impl.1} parent=119 // pred_fallthru
          _
      $region120: #{_stft_impl.1} parent=5 // pred_fallthru
        _
    $region6: #{_stft_impl.1} parent=1 // loop_footer
      %s15 = sadd.s32 1, %s11
    $region7: #{_stft_impl.1} parent=1 // loop_footer_branch
      %10 = sbr.rel target = $region3
    $region8: #{_stft_impl.1} parent=1 // loop_exit
      _

</llo_original>
